<compile_context>
chip_gen: v5e
topology: v5e:2x2
jax: 0.10.0
libtpu: 0.0.40
codegen_flags: <defaults>
</compile_context>

<pallas_src>
import functools

import jax
import jax.numpy as jnp
from jax.experimental import pallas as pl
from jax.experimental.pallas import tpu as pltpu

N_HIDDEN = 128
LANE = 128
SUBLANE = 8


def _round_up(n, m):
    return ((n + m - 1) // m) * m


def _dqn_kernel(x_ref, w1_ref, b1_ref, w2_ref, b2_ref, w3_ref, b3_ref,
                out_ref, acc_ref):
    # Layer 1: x @ W1 + b1, ReLU. Accumulate f32 in VMEM scratch.
    acc_ref[...] = (
        jnp.dot(x_ref[...], w1_ref[...], preferred_element_type=jnp.float32)
        + b1_ref[...]
    )
    h1 = jnp.maximum(acc_ref[...], 0.0).astype(w2_ref.dtype)

    # Layer 2: h1 @ W2 + b2, ReLU (reuse the same scratch accumulator).
    acc_ref[...] = (
        jnp.dot(h1, w2_ref[...], preferred_element_type=jnp.float32)
        + b2_ref[...]
    )
    h2 = jnp.maximum(acc_ref[...], 0.0).astype(w3_ref.dtype)

    # Layer 3: h2 @ W3 + b3 (no activation). Output tile is lane-dense (128-wide).
    out_ref[...] = (
        jnp.dot(h2, w3_ref[...], preferred_element_type=jnp.float32)
        + b3_ref[...]
    )


@functools.partial(jax.jit, static_argnames=("block_m", "compute_dtype"))
def dqn_forward(x, w1, b1, w2, b2, w3, b3, *, block_m=512,
                compute_dtype=jnp.bfloat16):
    """Pallas forward pass for the DQN MLP.

    x:  (B, n_obs) f32
    w1: (n_obs, N_HIDDEN), b1: (1, N_HIDDEN)
    w2: (N_HIDDEN, N_HIDDEN), b2: (1, N_HIDDEN)
    w3: (N_HIDDEN, n_actions), b3: (1, n_actions)
    returns (B, n_actions) f32
    """
    batch, n_obs = x.shape
    n_actions = w3.shape[1]

    # Lane-dense output: pad layer-3 columns (and bias) to a multiple of 128.
    na_pad = _round_up(n_actions, LANE)
    if na_pad != n_actions:
        w3 = jnp.pad(w3, ((0, 0), (0, na_pad - n_actions)))
        b3 = jnp.pad(b3, ((0, 0), (0, na_pad - n_actions)))

    # MXU-native compute dtype for x / weights; f32 biases & accumulation.
    xc = x.astype(compute_dtype)
    w1c = w1.astype(compute_dtype)
    w2c = w2.astype(compute_dtype)
    w3c = w3.astype(compute_dtype)
    b1f = b1.astype(jnp.float32)
    b2f = b2.astype(jnp.float32)
    b3f = b3.astype(jnp.float32)

    # Batch tile: large enough to fill the MXU M-dim, clamped for tiny batches.
    tm = min(block_m, _round_up(batch, SUBLANE))
    grid = (pl.cdiv(batch, tm),)

    flops = 2 * batch * (n_obs * N_HIDDEN + N_HIDDEN * N_HIDDEN
                         + N_HIDDEN * na_pad)
    bytes_accessed = (
        xc.size * xc.dtype.itemsize
        + batch * na_pad * 4
        + sum(a.size * a.dtype.itemsize
              for a in (w1c, w2c, w3c, b1f, b2f, b3f))
    )

    out = pl.pallas_call(
        _dqn_kernel,
        out_shape=jax.ShapeDtypeStruct((batch, na_pad), jnp.float32),
        grid=grid,
        in_specs=[
            pl.BlockSpec((tm, n_obs), lambda i: (i, 0)),            # x tile
            pl.BlockSpec((n_obs, N_HIDDEN), lambda i: (0, 0)),      # w1 (resident)
            pl.BlockSpec((1, N_HIDDEN), lambda i: (0, 0)),          # b1
            pl.BlockSpec((N_HIDDEN, N_HIDDEN), lambda i: (0, 0)),   # w2
            pl.BlockSpec((1, N_HIDDEN), lambda i: (0, 0)),          # b2
            pl.BlockSpec((N_HIDDEN, na_pad), lambda i: (0, 0)),     # w3 (padded)
            pl.BlockSpec((1, na_pad), lambda i: (0, 0)),            # b3 (padded)
        ],
        out_specs=pl.BlockSpec((tm, na_pad), lambda i: (i, 0)),
        scratch_shapes=[pltpu.VMEM((tm, N_HIDDEN), jnp.float32)],
        compiler_params=pltpu.CompilerParams(
            dimension_semantics=("parallel",)),
        cost_estimate=pl.CostEstimate(
            flops=flops, transcendentals=0, bytes_accessed=bytes_accessed),
    )(xc, w1c, b1f, w2c, b2f, w3c, b3f)

    # Slice padded action columns back off.
    return out[:, :n_actions]


def init_dqn_params(key, n_observations, n_actions):
    """Deterministic init mirroring PyTorch nn.Linear default
    (uniform(-1/sqrt(fan_in), 1/sqrt(fan_in))), with weights stored as (in, out)."""
    ks = jax.random.split(key, 6)

    def linear(kw, kb, fan_in, fan_out):
        bound = 1.0 / jnp.sqrt(jnp.float32(fan_in))
        w = jax.random.uniform(kw, (fan_in, fan_out), jnp.float32, -bound, bound)
        b = jax.random.uniform(kb, (1, fan_out), jnp.float32, -bound, bound)
        return w, b

    w1, b1 = linear(ks[0], ks[1], n_observations, N_HIDDEN)
    w2, b2 = linear(ks[2], ks[3], N_HIDDEN, N_HIDDEN)
    w3, b3 = linear(ks[4], ks[5], N_HIDDEN, n_actions)
    return w1, b1, w2, b2, w3, b3


if __name__ == "__main__":
    key = jax.random.PRNGKey(0)
    k_x, k_p = jax.random.split(key)

    batch = 2
    n_observations = 16
    n_actions = 8

    x = jax.random.normal(k_x, (batch, n_observations), jnp.float32)
    params = init_dqn_params(k_p, n_observations, n_actions)

    out = dqn_forward(x, *params)
    out = jax.block_until_ready(out)

    w1, b1, w2, b2, w3, b3 = params

    # Precision-matched reference (bf16 inputs, f32 accumulation) — tight check.
    def bdot(a, b):
        return jnp.dot(a.astype(jnp.bfloat16), b.astype(jnp.bfloat16),
                       preferred_element_type=jnp.float32)

    h = jnp.maximum(bdot(x, w1) + b1, 0.0)
    h = jnp.maximum(bdot(h, w2) + b2, 0.0)
    ref_bf16 = bdot(h, w3) + b3

    # Full-f32 reference (original PyTorch semantics) — looser check vs bf16 MXU path.
    h = jnp.maximum(x @ w1 + b1, 0.0)
    h = jnp.maximum(h @ w2 + b2, 0.0)
    ref_f32 = h @ w3 + b3

    assert out.shape == (batch, n_actions)
    assert jnp.allclose(out, ref_bf16, atol=1e-3, rtol=1e-3)
    assert jnp.allclose(out, ref_f32, atol=5e-2, rtol=5e-2)

    print("KERNEL_OK")
</pallas_src>

<mosaic_0001>
module attributes {stable_mosaic.version = 11 : i64} {
  func.func @_dqn_kernel(%arg0: i32, %arg1: memref<8x16xbf16, #tpu.memory_space<vmem>>, %arg2: memref<16x128xbf16, #tpu.memory_space<vmem>>, %arg3: memref<1x128xf32, #tpu.memory_space<vmem>>, %arg4: memref<128x128xbf16, #tpu.memory_space<vmem>>, %arg5: memref<1x128xf32, #tpu.memory_space<vmem>>, %arg6: memref<128x128xbf16, #tpu.memory_space<vmem>>, %arg7: memref<1x128xf32, #tpu.memory_space<vmem>>, %arg8: memref<8x128xf32, #tpu.memory_space<vmem>>, %arg9: memref<8x128xf32, #tpu.memory_space<vmem>>) attributes {dimension_semantics = [#tpu.dimension_semantics<parallel>], iteration_bounds = array<i64: 1>, scalar_prefetch = 0 : i64, scratch_operands = 1 : i64, tpu.core_type = #tpu.core_type<tc>, window_params = [{transform_indices = @transform_0, window_bounds = array<i64: 8, 16>}, {pipeline_mode = #tpu.pipeline_mode<synchronous>, transform_indices = @transform_1, window_bounds = array<i64: 16, 128>}, {pipeline_mode = #tpu.pipeline_mode<synchronous>, transform_indices = @transform_2, window_bounds = array<i64: 1, 128>}, {pipeline_mode = #tpu.pipeline_mode<synchronous>, transform_indices = @transform_3, window_bounds = array<i64: 128, 128>}, {pipeline_mode = #tpu.pipeline_mode<synchronous>, transform_indices = @transform_4, window_bounds = array<i64: 1, 128>}, {pipeline_mode = #tpu.pipeline_mode<synchronous>, transform_indices = @transform_5, window_bounds = array<i64: 128, 128>}, {pipeline_mode = #tpu.pipeline_mode<synchronous>, transform_indices = @transform_6, window_bounds = array<i64: 1, 128>}, {transform_indices = @transform_7, window_bounds = array<i64: 8, 128>}]} {
    %c0 = arith.constant 0 : index
    %c0_0 = arith.constant 0 : index
    %0 = vector.load %arg1[%c0, %c0_0] : memref<8x16xbf16, #tpu.memory_space<vmem>>, vector<8x16xbf16>
    %c0_1 = arith.constant 0 : index
    %c0_2 = arith.constant 0 : index
    %1 = vector.load %arg2[%c0_1, %c0_2] : memref<16x128xbf16, #tpu.memory_space<vmem>>, vector<16x128xbf16>
    %cst = arith.constant dense<0.000000e+00> : vector<8x128xf32>
    %2 = tpu.matmul %0, %1, %cst {dimension_numbers = #tpu.dot_dimension_numbers<[1], [0], [0], [1], [0, 0, 1, 1], [], []>} : vector<8x16xbf16>, vector<16x128xbf16>, vector<8x128xf32> -> vector<8x128xf32>
    %c0_3 = arith.constant 0 : index
    %c0_4 = arith.constant 0 : index
    %3 = vector.load %arg3[%c0_3, %c0_4] : memref<1x128xf32, #tpu.memory_space<vmem>>, vector<1x128xf32>
    %4 = vector.broadcast %3 : vector<1x128xf32> to vector<8x128xf32>
    %5 = arith.addf %2, %4 : vector<8x128xf32>
    %c0_5 = arith.constant 0 : index
    %c0_6 = arith.constant 0 : index
    %6 = vector.load %arg9[%c0_5, %c0_6] : memref<8x128xf32, #tpu.memory_space<vmem>>, vector<8x128xf32>
    tpu.vector_store %arg9[%c0_5, %c0_6], %5 {strides = array<i32>} : memref<8x128xf32, #tpu.memory_space<vmem>>, vector<8x128xf32>,
    %c0_7 = arith.constant 0 : index
    %c0_8 = arith.constant 0 : index
    %7 = vector.load %arg9[%c0_7, %c0_8] : memref<8x128xf32, #tpu.memory_space<vmem>>, vector<8x128xf32>
    %cst_9 = arith.constant 0.000000e+00 : f32
    %8 = vector.broadcast %cst_9 : f32 to vector<8x128xf32>
    %9 = arith.maximumf %7, %8 : vector<8x128xf32>
    %10 = arith.truncf %9 : vector<8x128xf32> to vector<8x128xbf16>
    %c0_10 = arith.constant 0 : index
    %c0_11 = arith.constant 0 : index
    %11 = vector.load %arg4[%c0_10, %c0_11] : memref<128x128xbf16, #tpu.memory_space<vmem>>, vector<128x128xbf16>
    %cst_12 = arith.constant dense<0.000000e+00> : vector<8x128xf32>
    %12 = tpu.matmul %10, %11, %cst_12 {dimension_numbers = #tpu.dot_dimension_numbers<[1], [0], [0], [1], [0, 0, 1, 1], [], []>} : vector<8x128xbf16>, vector<128x128xbf16>, vector<8x128xf32> -> vector<8x128xf32>
    %c0_13 = arith.constant 0 : index
    %c0_14 = arith.constant 0 : index
    %13 = vector.load %arg5[%c0_13, %c0_14] : memref<1x128xf32, #tpu.memory_space<vmem>>, vector<1x128xf32>
    %14 = vector.broadcast %13 : vector<1x128xf32> to vector<8x128xf32>
    %15 = arith.addf %12, %14 : vector<8x128xf32>
    %c0_15 = arith.constant 0 : index
    %c0_16 = arith.constant 0 : index
    %16 = vector.load %arg9[%c0_15, %c0_16] : memref<8x128xf32, #tpu.memory_space<vmem>>, vector<8x128xf32>
    tpu.vector_store %arg9[%c0_15, %c0_16], %15 {strides = array<i32>} : memref<8x128xf32, #tpu.memory_space<vmem>>, vector<8x128xf32>,
    %c0_17 = arith.constant 0 : index
    %c0_18 = arith.constant 0 : index
    %17 = vector.load %arg9[%c0_17, %c0_18] : memref<8x128xf32, #tpu.memory_space<vmem>>, vector<8x128xf32>
    %cst_19 = arith.constant 0.000000e+00 : f32
    %18 = vector.broadcast %cst_19 : f32 to vector<8x128xf32>
    %19 = arith.maximumf %17, %18 : vector<8x128xf32>
    %20 = arith.truncf %19 : vector<8x128xf32> to vector<8x128xbf16>
    %c0_20 = arith.constant 0 : index
    %c0_21 = arith.constant 0 : index
    %21 = vector.load %arg6[%c0_20, %c0_21] : memref<128x128xbf16, #tpu.memory_space<vmem>>, vector<128x128xbf16>
    %cst_22 = arith.constant dense<0.000000e+00> : vector<8x128xf32>
    %22 = tpu.matmul %20, %21, %cst_22 {dimension_numbers = #tpu.dot_dimension_numbers<[1], [0], [0], [1], [0, 0, 1, 1], [], []>} : vector<8x128xbf16>, vector<128x128xbf16>, vector<8x128xf32> -> vector<8x128xf32>
    %c0_23 = arith.constant 0 : index
    %c0_24 = arith.constant 0 : index
    %23 = vector.load %arg7[%c0_23, %c0_24] : memref<1x128xf32, #tpu.memory_space<vmem>>, vector<1x128xf32>
    %24 = vector.broadcast %23 : vector<1x128xf32> to vector<8x128xf32>
    %25 = arith.addf %22, %24 : vector<8x128xf32>
    %c0_25 = arith.constant 0 : index
    %c0_26 = arith.constant 0 : index
    %26 = vector.load %arg8[%c0_25, %c0_26] : memref<8x128xf32, #tpu.memory_space<vmem>>, vector<8x128xf32>
    tpu.vector_store %arg8[%c0_25, %c0_26], %25 {strides = array<i32>} : memref<8x128xf32, #tpu.memory_space<vmem>>, vector<8x128xf32>,
    return
  }
  func.func @transform_0(%arg0: i32) -> (i32, i32) {
    %c0_i32 = arith.constant 0 : i32
    %c0_i32_0 = arith.constant 0 : i32
    return %arg0, %c0_i32 : i32, i32
  }
  func.func @transform_1(%arg0: i32) -> (i32, i32) {
    %c0_i32 = arith.constant 0 : i32
    %c0_i32_0 = arith.constant 0 : i32
    %c0_i32_1 = arith.constant 0 : i32
    return %c0_i32, %c0_i32_0 : i32, i32
  }
  func.func @transform_2(%arg0: i32) -> (i32, i32) {
    %c0_i32 = arith.constant 0 : i32
    %c0_i32_0 = arith.constant 0 : i32
    %c0_i32_1 = arith.constant 0 : i32
    return %c0_i32, %c0_i32_0 : i32, i32
  }
  func.func @transform_3(%arg0: i32) -> (i32, i32) {
    %c0_i32 = arith.constant 0 : i32
    %c0_i32_0 = arith.constant 0 : i32
    %c0_i32_1 = arith.constant 0 : i32
    return %c0_i32, %c0_i32_0 : i32, i32
  }
  func.func @transform_4(%arg0: i32) -> (i32, i32) {
    %c0_i32 = arith.constant 0 : i32
    %c0_i32_0 = arith.constant 0 : i32
    %c0_i32_1 = arith.constant 0 : i32
    return %c0_i32, %c0_i32_0 : i32, i32
  }
  func.func @transform_5(%arg0: i32) -> (i32, i32) {
    %c0_i32 = arith.constant 0 : i32
    %c0_i32_0 = arith.constant 0 : i32
    %c0_i32_1 = arith.constant 0 : i32
    return %c0_i32, %c0_i32_0 : i32, i32
  }
  func.func @transform_6(%arg0: i32) -> (i32, i32) {
    %c0_i32 = arith.constant 0 : i32
    %c0_i32_0 = arith.constant 0 : i32
    %c0_i32_1 = arith.constant 0 : i32
    return %c0_i32, %c0_i32_0 : i32, i32
  }
  func.func @transform_7(%arg0: i32) -> (i32, i32) {
    %c0_i32 = arith.constant 0 : i32
    %c0_i32_0 = arith.constant 0 : i32
    return %arg0, %c0_i32 : i32, i32
  }
}

</mosaic_0001>

<llo_original>
// kernel: dqn_forward.1
$region0: #{dqn_forward.1}
  #allocation0 [shape = 'u32[]', space=smem, size = 0x4, offset = 0x4, fixed_abs, tag = 'smem constant byte address 0x4 - core index']
  #allocation1 [shape = 'u32[72,128]{1,0:T(1,128)}', space=vmem, size = 0x9000, scoped, tag = 'internal scratch']
  #allocation2 [shape = 'f32[8,128]{1,0:T(8,128)}', space=vmem, size = 0x1000, scoped, tag = 'scratch operand']
  %s0 = inlined_call_operand.vmem [shape: bf16[2,16], index: 0, kind: input, shape index: {}]
  %s1 = inlined_call_operand.vmem [shape: bf16[16,128], index: 1, kind: input, shape index: {}]
  %s2 = inlined_call_operand.vmem [shape: f32[1,128], index: 2, kind: input, shape index: {}]
  %s3 = inlined_call_operand.vmem [shape: bf16[128,128], index: 3, kind: input, shape index: {}]
  %s4 = inlined_call_operand.vmem [shape: f32[1,128], index: 4, kind: input, shape index: {}]
  %s5 = inlined_call_operand.vmem [shape: bf16[128,128], index: 5, kind: input, shape index: {}]
  %s6 = inlined_call_operand.vmem [shape: f32[1,128], index: 6, kind: input, shape index: {}]
  %s7 = inlined_call_operand.hbm [shape: f32[2,128], index: 7, kind: output, shape index: {}]
  %s8 = sld [smem:[#allocation0]]
  $region38: #{dqn_forward.1} parent=0
    _
  %s10 = ssub.s32 1, %s8
  %s11 = scalar_select 0, %s10, %s8
  $region1: #{dqn_forward.1} parent=0
    #allocation3 [shape = 'u8[4096]{0}', space=vmem, size = 0x1000, scoped, tag = 'output window, operand 0, single buffered']
    #allocation4 [shape = 's32[1]{0}', space=sflag, size = 0x4, scoped, tag = 'scoped memory for dqn_forward.1']
    %12 = vsyncpa [#allocation4], 0
    // Predicated region
    $region2: #{dqn_forward.1} parent=1 // pred_check
      _
    $region3: #{dqn_forward.1} parent=1 // pred_check_branch
      %14 = sbr.rel (0) target = $region5
    $region4: #{dqn_forward.1} parent=1 // pred_region
      _
    $region5: #{dqn_forward.1} parent=1 // pred_fallthru
      _
    // Predicated region
    $region6: #{dqn_forward.1} parent=1 // pred_check
      _
    $region7: #{dqn_forward.1} parent=1 // pred_check_branch
      %16 = sbr.rel (0) target = $region9
    $region8: #{dqn_forward.1} parent=1 // pred_region
      _
    $region9: #{dqn_forward.1} parent=1 // pred_fallthru
      _
    // Predicated region
    $region10: #{dqn_forward.1} parent=1 // pred_check
      _
    $region11: #{dqn_forward.1} parent=1 // pred_check_branch
      %18 = sbr.rel (0) target = $region13
    $region12: #{dqn_forward.1} parent=1 // pred_region
      _
    $region13: #{dqn_forward.1} parent=1 // pred_fallthru
      _
    // Predicated region
    $region14: #{dqn_forward.1} parent=1 // pred_check
      _
    $region15: #{dqn_forward.1} parent=1 // pred_check_branch
      %20 = sbr.rel (0) target = $region17
    $region16: #{dqn_forward.1} parent=1 // pred_region
      _
    $region17: #{dqn_forward.1} parent=1 // pred_fallthru
      _
    // Predicated region
    $region18: #{dqn_forward.1} parent=1 // pred_check
      _
    $region19: #{dqn_forward.1} parent=1 // pred_check_branch
      %22 = sbr.rel (0) target = $region21
    $region20: #{dqn_forward.1} parent=1 // pred_region
      _
    $region21: #{dqn_forward.1} parent=1 // pred_fallthru
      _
    // Predicated region
    $region22: #{dqn_forward.1} parent=1 // pred_check
      _
    $region23: #{dqn_forward.1} parent=1 // pred_check_branch
      %24 = sbr.rel (0) target = $region25
    $region24: #{dqn_forward.1} parent=1 // pred_region
      _
    $region25: #{dqn_forward.1} parent=1 // pred_fallthru
      _
    // Predicated region
    $region26: #{dqn_forward.1} parent=1 // pred_check
      _
    $region27: #{dqn_forward.1} parent=1 // pred_check_branch
      %26 = sbr.rel (0) target = $region29
    $region28: #{dqn_forward.1} parent=1 // pred_region
      _
    $region29: #{dqn_forward.1} parent=1 // pred_fallthru
      _
    %v28 = vld [vmem:[%s0] sm:$0x1]
    %v29 = vld [vmem:[%s0 + $0x1] sm:$0x1]
    %v30 = vld [vmem:[%s0 + $0x2] sm:$0x1]
    %v31 = vld [vmem:[%s0 + $0x3] sm:$0x1]
    %v32 = vld [vmem:[%s1] sm:$0xf]
    %v33 = vld [vmem:[%s1 + $0x4] sm:$0xf]
    %v34 = vld [vmem:[%s2] sm:$0x1]
    %v36 = vperm.slane %v34, 0
    %39 = vst [vmem:[#allocation1] ss:$9 sm:$0xff] %v28
    %s41 = scalar_lea.vmem [#allocation1], 1
    %42 = vst [vmem:[%s41] ss:$9 sm:$0xff] %v29
    %s44 = scalar_lea.vmem [#allocation1], 2
    %45 = vst [vmem:[%s44] ss:$9 sm:$0xff] %v30
    %s47 = scalar_lea.vmem [#allocation1], 3
    %48 = vst [vmem:[%s47] ss:$9 sm:$0xff] %v31
    %v49 = vld [vmem:[#allocation1] sm:$0xff]
    %v52 = vunpack.c.l.b16 %v32
    %v53 = vunpack.c.l.b16 %v33
    %v54 = vpack.c.b16 %v53, %v52
    %vm56 = vcmask 130048
    %v57 = vsel %vm56, %v49, 0
    %59 = vmatpush.bf16.msra.mxu0 0
    %60 = vmatpush.bf16.msra.mxu0 0
    %61 = vmatpush.bf16.msra.mxu0 0
    %62 = vmatpush.bf16.msra.mxu0 0
    %63 = vmatpush.bf16.msra.mxu0 0
    %64 = vmatpush.bf16.msra.mxu0 0
    %65 = vmatpush.bf16.msra.mxu0 0
    %66 = vmatpush.bf16.msra.mxu0 %v54
    %67 = vmatmul.bf16.gmra.mxu0 %v57
    %v68 = vpop.f32.mrf.mxu0
    %v69 = vadd.f32 %v36, %v68
    %v70 = vpop.f32.mrf.mxu0
    %71 = vdwg.mxu0
    %72 = vst [vmem:[#allocation2] sm:$0xff] %v69
    %v73 = vld [vmem:[#allocation2] sm:$0xff]
    %v74 = vmax.f32 %v73, 0.0
    %v75 = vpack.c.bf16 %v74, %v74
    %v76 = vld [vmem:[%s3] sm:$0xf]
    %v77 = vld [vmem:[%s3 + $0x4] sm:$0xf]
    %v78 = vld [vmem:[%s3 + $0x8] sm:$0xf]
    %v79 = vld [vmem:[%s3 + $0xc] sm:$0xf]
    %v80 = vld [vmem:[%s3 + $0x10] sm:$0xf]
    %v81 = vld [vmem:[%s3 + $0x14] sm:$0xf]
    %v82 = vld [vmem:[%s3 + $0x18] sm:$0xf]
    %v83 = vld [vmem:[%s3 + $0x1c] sm:$0xf]
    %v84 = vld [vmem:[%s3 + $0x20] sm:$0xf]
    %v85 = vld [vmem:[%s3 + $0x24] sm:$0xf]
    %v86 = vld [vmem:[%s3 + $0x28] sm:$0xf]
    %v87 = vld [vmem:[%s3 + $0x2c] sm:$0xf]
    %v88 = vld [vmem:[%s3 + $0x30] sm:$0xf]
    %v89 = vld [vmem:[%s3 + $0x34] sm:$0xf]
    %v90 = vld [vmem:[%s3 + $0x38] sm:$0xf]
    %v91 = vld [vmem:[%s3 + $0x3c] sm:$0xf]
    %v92 = vld [vmem:[%s4] sm:$0x1]
    %v94 = vperm.slane %v92, 0
    %v112 = vunpack.c.l.b16 %v76
    %v113 = vunpack.c.l.b16 %v77
    %v114 = vunpack.c.l.b16 %v78
    %v115 = vunpack.c.l.b16 %v79
    %v116 = vunpack.c.l.b16 %v80
    %v117 = vunpack.c.l.b16 %v81
    %v118 = vunpack.c.l.b16 %v82
    %v119 = vunpack.c.l.b16 %v83
    %v120 = vunpack.c.l.b16 %v84
    %v121 = vunpack.c.l.b16 %v85
    %v122 = vunpack.c.l.b16 %v86
    %v123 = vunpack.c.l.b16 %v87
    %v124 = vunpack.c.l.b16 %v88
    %v125 = vunpack.c.l.b16 %v89
    %v126 = vunpack.c.l.b16 %v90
    %v127 = vunpack.c.l.b16 %v91
    %v128 = vpack.c.b16 %v113, %v112
    %v129 = vpack.c.b16 %v115, %v114
    %v130 = vpack.c.b16 %v117, %v116
    %v131 = vpack.c.b16 %v119, %v118
    %v132 = vpack.c.b16 %v121, %v120
    %v133 = vpack.c.b16 %v123, %v122
    %v134 = vpack.c.b16 %v125, %v124
    %v135 = vpack.c.b16 %v127, %v126
    %144 = vmatpush.bf16.msra.mxu0 %v135
    %145 = vmatpush.bf16.msra.mxu0 %v134
    %146 = vmatpush.bf16.msra.mxu0 %v133
    %147 = vmatpush.bf16.msra.mxu0 %v132
    %148 = vmatpush.bf16.msra.mxu0 %v131
    %149 = vmatpush.bf16.msra.mxu0 %v130
    %150 = vmatpush.bf16.msra.mxu0 %v129
    %151 = vmatpush.bf16.msra.mxu0 %v128
    %152 = vmatmul.bf16.gmra.mxu0 %v75
    %v153 = vpop.f32.mrf.mxu0
    %v154 = vadd.f32 %v94, %v153
    %v155 = vpop.f32.mrf.mxu0
    %156 = vdwg.mxu0
    %157 = vst [vmem:[#allocation2] sm:$0xff] %v154
    %v158 = vld [vmem:[#allocation2] sm:$0xff]
    %v159 = vmax.f32 %v158, 0.0
    %v160 = vpack.c.bf16 %v159, %v159
    %v161 = vld [vmem:[%s5] sm:$0xf]
    %v162 = vld [vmem:[%s5 + $0x4] sm:$0xf]
    %v163 = vld [vmem:[%s5 + $0x8] sm:$0xf]
    %v164 = vld [vmem:[%s5 + $0xc] sm:$0xf]
    %v165 = vld [vmem:[%s5 + $0x10] sm:$0xf]
    %v166 = vld [vmem:[%s5 + $0x14] sm:$0xf]
    %v167 = vld [vmem:[%s5 + $0x18] sm:$0xf]
    %v168 = vld [vmem:[%s5 + $0x1c] sm:$0xf]
    %v169 = vld [vmem:[%s5 + $0x20] sm:$0xf]
    %v170 = vld [vmem:[%s5 + $0x24] sm:$0xf]
    %v171 = vld [vmem:[%s5 + $0x28] sm:$0xf]
    %v172 = vld [vmem:[%s5 + $0x2c] sm:$0xf]
    %v173 = vld [vmem:[%s5 + $0x30] sm:$0xf]
    %v174 = vld [vmem:[%s5 + $0x34] sm:$0xf]
    %v175 = vld [vmem:[%s5 + $0x38] sm:$0xf]
    %v176 = vld [vmem:[%s5 + $0x3c] sm:$0xf]
    %v177 = vld [vmem:[%s6] sm:$0x1]
    %v179 = vperm.slane %v177, 0
    %v197 = vunpack.c.l.b16 %v161
    %v198 = vunpack.c.l.b16 %v162
    %v199 = vunpack.c.l.b16 %v163
    %v200 = vunpack.c.l.b16 %v164
    %v201 = vunpack.c.l.b16 %v165
    %v202 = vunpack.c.l.b16 %v166
    %v203 = vunpack.c.l.b16 %v167
    %v204 = vunpack.c.l.b16 %v168
    %v205 = vunpack.c.l.b16 %v169
    %v206 = vunpack.c.l.b16 %v170
    %v207 = vunpack.c.l.b16 %v171
    %v208 = vunpack.c.l.b16 %v172
    %v209 = vunpack.c.l.b16 %v173
    %v210 = vunpack.c.l.b16 %v174
    %v211 = vunpack.c.l.b16 %v175
    %v212 = vunpack.c.l.b16 %v176
    %v213 = vpack.c.b16 %v198, %v197
    %v214 = vpack.c.b16 %v200, %v199
    %v215 = vpack.c.b16 %v202, %v201
    %v216 = vpack.c.b16 %v204, %v203
    %v217 = vpack.c.b16 %v206, %v205
    %v218 = vpack.c.b16 %v208, %v207
    %v219 = vpack.c.b16 %v210, %v209
    %v220 = vpack.c.b16 %v212, %v211
    %229 = vmatpush.bf16.msra.mxu0 %v220
    %230 = vmatpush.bf16.msra.mxu0 %v219
    %231 = vmatpush.bf16.msra.mxu0 %v218
    %232 = vmatpush.bf16.msra.mxu0 %v217
    %233 = vmatpush.bf16.msra.mxu0 %v216
    %234 = vmatpush.bf16.msra.mxu0 %v215
    %235 = vmatpush.bf16.msra.mxu0 %v214
    %236 = vmatpush.bf16.msra.mxu0 %v213
    %237 = vmatmul.bf16.gmra.mxu0 %v160
    %v238 = vpop.f32.mrf.mxu0
    %v239 = vadd.f32 %v179, %v238
    %v240 = vpop.f32.mrf.mxu0
    %241 = vdwg.mxu0
    %242 = vst [vmem:[#allocation3] sm:$0xff] %v239
    // Predicated region
    $region30: #{dqn_forward.1} parent=1 // pred_check
      _
    $region31: #{dqn_forward.1} parent=1 // pred_check_branch
      %244 = sbr.rel (0) target = $region33
    $region32: #{dqn_forward.1} parent=1 // pred_region
      %246 = vsyncadd [#allocation4], 96
      %s247 = sshll.u32 [#allocation3], 4
      %s248 = int_to_ptr.vmem [resolvable:$true] %s247
      %s249 = sshll.u32 %s7, 4
      %s250 = int_to_ptr.hbm [resolvable:$true] %s249
      %255 = dma.vmem_to_hbm [thread:$0]  %s248, 32, %s250, [#allocation4], 32, 32, 2
    $region33: #{dqn_forward.1} parent=1 // pred_fallthru
      _
    // Predicated region
    $region34: #{dqn_forward.1} parent=1 // pred_check
      _
    $region35: #{dqn_forward.1} parent=1 // pred_check_branch
      %257 = sbr.rel (0) target = $region37
    $region36: #{dqn_forward.1} parent=1 // pred_region
      %259 = dma.done [#allocation4], 128
    $region37: #{dqn_forward.1} parent=1 // pred_fallthru
      _
    %260 = vsyncpa [#allocation4], 1

</llo_original>
